<compile_context>
chip_gen: v7x
topology: tpu7x:2x2x1
jax: 0.10.0
libtpu: 0.0.40
codegen_flags: <defaults>
</compile_context>

<pallas_src>
import functools

import jax
import jax.numpy as jnp
from jax.experimental import pallas as pl
from jax.experimental.pallas import tpu as pltpu


def _feature_correlation_kernel(a_ref, b_ref, o_ref, *, mxu_dtype):
    # a_ref: (c, tj) columns of feature_A  -> output columns
    # b_ref: (c, ti) columns of feature_B  -> output rows
    # o_ref: (ti, tj) output correlation tile
    a = a_ref[...].astype(jnp.float32)
    bb = b_ref[...].astype(jnp.float32)

    # F.normalize(x, p=2, dim=1): x / max(||x||, 1e-12) == x * rsqrt(max(||x||^2, 1e-24))
    eps2 = jnp.float32(1e-24)
    a_n = a * jax.lax.rsqrt(jnp.maximum(jnp.sum(a * a, axis=0, keepdims=True), eps2))
    b_n = bb * jax.lax.rsqrt(jnp.maximum(jnp.sum(bb * bb, axis=0, keepdims=True), eps2))

    # corr[i, j] = sum_c b_n[c, i] * a_n[c, j]  (== bmm(B^T, A)); contraction over
    # dim 0 of both operands, no materialized transpose.  Operands optionally cast
    # to bf16 for the MXU, accumulation stays f32.
    o = jax.lax.dot_general(
        b_n.astype(mxu_dtype),
        a_n.astype(mxu_dtype),
        dimension_numbers=(((0,), (0,)), ((), ())),
        preferred_element_type=jnp.float32,
    )
    o_ref[...] = o.astype(o_ref.dtype)


def _vmem_budget():
    """(block budget, generation VMEM capacity) in bytes."""
    try:
        cap = int(pltpu.get_tpu_info().vmem_capacity_bytes)
    except Exception:
        cap = 64 << 20  # conservative: v7x per-TensorCore physical VMEM
    return min(cap // 2, 40 << 20), cap


def _tile_candidates(hw, cap):
    cands = set()
    t = 128
    while t <= min(hw, cap):   # multiples of 128, never larger than hw
        cands.add(t)
        t += 128
    if hw <= cap:
        cands.add(hw)          # full dim is always a legal block shape
    if not cands:
        cands.add(hw)          # hw < 128: single full-dim block
    return sorted(cands, reverse=True)


def _pick_tiles(hw, c, in_isz, out_isz, budget):
    """Pick (ti, tj): minimize A re-reads (row-tile count), then padded compute."""
    ti_cands = _tile_candidates(hw, 2048)
    tj_cands = _tile_candidates(hw, 512)

    def need(ti, tj):
        return int(
            3 * c * tj * in_isz                 # A block (up to 3-deep pipeline)
            + 2 * c * ti * in_isz               # B block (double buffered)
            + 2 * ti * tj * out_isz             # output block (double buffered)
            + 10 * c * (ti + tj) + 4 * ti * tj  # f32/bf16 in-kernel temporaries
        )

    best = None
    for ti in ti_cands:
        for tj in tj_cands:
            n = need(ti, tj)
            if n > budget:
                continue
            gi = -(-hw // ti)
            gj = -(-hw // tj)
            key = (gi, gi * ti * gj * tj, gj)   # A re-reads, padded work, steps
            if best is None or key < best[0]:
                best = (key, ti, tj, n)
    if best is None:  # nothing fits the budget: smallest tiles, still correct
        ti, tj = ti_cands[-1], tj_cands[-1]
        return ti, tj, need(ti, tj)
    return best[1], best[2], best[3]


def _block_spec(block_shape, index_map, buffers=2):
    if buffers > 2:
        try:
            return pl.BlockSpec(block_shape, index_map,
                                pipeline_mode=pl.Buffered(buffers))
        except TypeError:  # older BlockSpec signature without pipeline_mode
            pass
    return pl.BlockSpec(block_shape, index_map)


def feature_correlation(feature_A, feature_B, *, use_bf16_matmul=True, out_dtype=None):
    """Pallas implementation of FeatureCorrelation.forward.

    Args:
      feature_A: (b, c, h, w) array (NCHW).
      feature_B: (b, c, h, w) array (NCHW).
      use_bf16_matmul: feed the MXU bf16 operands (normalization/accumulation f32).
      out_dtype: output dtype; defaults to the input dtype (PyTorch propagation).
    Returns:
      correlation: (b, h*w, h, w) array of `out_dtype`.
    """
    b, c, h, w = feature_A.shape
    assert feature_B.shape == (b, c, h, w), (feature_A.shape, feature_B.shape)
    hw = h * w

    if out_dtype is None:
        out_dtype = jnp.result_type(feature_A.dtype, feature_B.dtype)
    out_dtype = jnp.dtype(out_dtype)
    in_isz = max(jnp.dtype(feature_A.dtype).itemsize,
                 jnp.dtype(feature_B.dtype).itemsize)
    out_isz = out_dtype.itemsize

    # Cheap reshapes only — no padding, no dtype cast (blocks upcast in-kernel).
    a_flat = feature_A.reshape(b, c, hw)
    b_flat = feature_B.reshape(b, c, hw)

    budget, vmem_cap = _vmem_budget()
    ti, tj, need_bytes = _pick_tiles(hw, c, in_isz, out_isz, budget)
    gi = pl.cdiv(hw, ti)
    gj = pl.cdiv(hw, tj)

    mxu_dtype = jnp.bfloat16 if use_bf16_matmul else jnp.float32
    kernel = functools.partial(_feature_correlation_kernel, mxu_dtype=mxu_dtype)

    # Grid (i, b, j): j innermost so the B block index is constant across the
    # inner loop (fetched once per output-row tile); leading parallel axis has
    # extent > 1 even for b == 1 (v7x megacore).
    a_map = lambda i, bi, j: (bi, 0, j)   # A supplies output columns
    b_map = lambda i, bi, j: (bi, 0, i)   # B supplies output rows
    o_map = lambda i, bi, j: (bi, i, j)

    a_buffers = 3 if gj >= 3 else 2       # deeper pipeline only when it can help
    in_specs = [
        _block_spec((pl.Squeezed(), c, tj), a_map, buffers=a_buffers),
        pl.BlockSpec((pl.Squeezed(), c, ti), b_map),
    ]
    out_spec = pl.BlockSpec((pl.Squeezed(), ti, tj), o_map)

    vmem_limit = max(need_bytes + (8 << 20), 32 << 20)
    vmem_limit = min(vmem_limit, max(vmem_cap - (16 << 20), 32 << 20))

    cost = pl.CostEstimate(
        flops=int(2 * b * c * hw * hw),
        transcendentals=int(b * gi * gj * (ti + tj)),
        bytes_accessed=int(b * gi * c * hw * in_isz     # A re-read per row tile
                           + b * c * hw * in_isz        # B read once per batch
                           + b * hw * hw * out_isz),    # output writes
    )

    out = pl.pallas_call(
        kernel,
        out_shape=jax.ShapeDtypeStruct((b, hw, hw), out_dtype),
        grid=(gi, b, gj),
        in_specs=in_specs,
        out_specs=out_spec,
        compiler_params=pltpu.CompilerParams(
            # c is contracted entirely inside the kernel -> every axis independent.
            dimension_semantics=("parallel", "parallel", "parallel"),
            vmem_limit_bytes=int(vmem_limit),
        ),
        cost_estimate=cost,
    )(a_flat, b_flat)

    return out.reshape(b, hw, h, w)


def _reference(feature_A, feature_B):
    # Pure-JAX reference replicating the PyTorch semantics (in f32).
    b, c, h, w = feature_A.shape
    eps = 1e-12
    a = feature_A / jnp.maximum(jnp.linalg.norm(feature_A, axis=1, keepdims=True), eps)
    fb = feature_B / jnp.maximum(jnp.linalg.norm(feature_B, axis=1, keepdims=True), eps)
    a = a.reshape(b, c, h * w)
    fb = fb.reshape(b, c, h * w).transpose(0, 2, 1)
    corr = jnp.einsum("bic,bcj->bij", fb, a)
    return corr.reshape(b, h * w, h, w)


if __name__ == "__main__":
    key = jax.random.PRNGKey(0)
    k1, k2 = jax.random.split(key)

    b, c, h, w = 2, 4, 16, 16
    feature_A = jax.random.normal(k1, (b, c, h, w), dtype=jnp.float32)
    feature_B = jax.random.normal(k2, (b, c, h, w), dtype=jnp.float32)
    ref = _reference(feature_A, feature_B)

    # Default path: bf16 MXU operands, f32 accumulation, output follows input dtype.
    out = jax.block_until_ready(feature_correlation(feature_A, feature_B))
    assert out.shape == (b, h * w, h, w), out.shape
    assert out.dtype == feature_A.dtype, out.dtype
    assert jnp.allclose(out, ref, atol=3e-2, rtol=3e-2), (
        float(jnp.max(jnp.abs(out - ref))))

    # Precise path: full-f32 MXU operands, tight tolerance vs the reference.
    out_precise = jax.block_until_ready(
        feature_correlation(feature_A, feature_B, use_bf16_matmul=False))
    assert jnp.allclose(out_precise, ref, atol=1e-5, rtol=1e-5), (
        float(jnp.max(jnp.abs(out_precise - ref))))

    # bf16 inputs propagate to a bf16 output (and exercise hw < 128 full-dim tiles).
    b2, c2, h2, w2 = 1, 8, 8, 12
    a16 = jax.random.normal(k1, (b2, c2, h2, w2), dtype=jnp.bfloat16)
    b16 = jax.random.normal(k2, (b2, c2, h2, w2), dtype=jnp.bfloat16)
    out16 = jax.block_until_ready(feature_correlation(a16, b16))
    assert out16.shape == (b2, h2 * w2, h2, w2), out16.shape
    assert out16.dtype == jnp.bfloat16, out16.dtype
    ref16 = _reference(a16.astype(jnp.float32), b16.astype(jnp.float32))
    assert jnp.allclose(out16.astype(jnp.float32), ref16, atol=6e-2, rtol=6e-2), (
        float(jnp.max(jnp.abs(out16.astype(jnp.float32) - ref16))))

    print("KERNEL_OK")
</pallas_src>

<mosaic_0001>
module attributes {stable_mosaic.version = 11 : i64} {
  func.func @_feature_correlation_kernel(%arg0: i32, %arg1: i32, %arg2: i32, %arg3: memref<1x4x256xf32, #tpu.memory_space<vmem>>, %arg4: memref<1x4x256xf32, #tpu.memory_space<vmem>>, %arg5: memref<1x256x256xf32, #tpu.memory_space<vmem>>) attributes {dimension_semantics = [#tpu.dimension_semantics<parallel>, #tpu.dimension_semantics<parallel>, #tpu.dimension_semantics<parallel>], iteration_bounds = array<i64: 1, 2, 1>, scalar_prefetch = 0 : i64, scratch_operands = 0 : i64, tpu.core_type = #tpu.core_type<tc>, window_params = [{transform_indices = @transform_0, window_bounds = array<i64: 1, 4, 256>}, {transform_indices = @transform_1, window_bounds = array<i64: 1, 4, 256>}, {transform_indices = @transform_2, window_bounds = array<i64: 1, 256, 256>}]} {
    %c0 = arith.constant 0 : index
    %c0_0 = arith.constant 0 : index
    %c0_1 = arith.constant 0 : index
    %0 = vector.load %arg3[%c0, %c0_0, %c0_1] : memref<1x4x256xf32, #tpu.memory_space<vmem>>, vector<1x4x256xf32>
    %1 = vector.shape_cast %0 : vector<1x4x256xf32> to vector<4x256xf32>
    %c0_2 = arith.constant 0 : index
    %c0_3 = arith.constant 0 : index
    %c0_4 = arith.constant 0 : index
    %2 = vector.load %arg4[%c0_2, %c0_3, %c0_4] : memref<1x4x256xf32, #tpu.memory_space<vmem>>, vector<1x4x256xf32>
    %3 = vector.shape_cast %2 : vector<1x4x256xf32> to vector<4x256xf32>
    %4 = arith.mulf %1, %1 : vector<4x256xf32>
    %cst = arith.constant dense<0.000000e+00> : vector<256xf32>
    %5 = vector.multi_reduction <add>, %4, %cst [0] : vector<4x256xf32> to vector<256xf32>
    %6 = vector.shape_cast %5 : vector<256xf32> to vector<1x256xf32>
    %cst_5 = arith.constant 1.000000e-24 : f32
    %7 = vector.broadcast %cst_5 : f32 to vector<1x256xf32>
    %8 = arith.maximumf %6, %7 : vector<1x256xf32>
    %9 = math.rsqrt %8 : vector<1x256xf32>
    %10 = vector.broadcast %9 : vector<1x256xf32> to vector<4x256xf32>
    %11 = arith.mulf %1, %10 : vector<4x256xf32>
    %12 = arith.mulf %3, %3 : vector<4x256xf32>
    %cst_6 = arith.constant dense<0.000000e+00> : vector<256xf32>
    %13 = vector.multi_reduction <add>, %12, %cst_6 [0] : vector<4x256xf32> to vector<256xf32>
    %14 = vector.shape_cast %13 : vector<256xf32> to vector<1x256xf32>
    %cst_7 = arith.constant 1.000000e-24 : f32
    %15 = vector.broadcast %cst_7 : f32 to vector<1x256xf32>
    %16 = arith.maximumf %14, %15 : vector<1x256xf32>
    %17 = math.rsqrt %16 : vector<1x256xf32>
    %18 = vector.broadcast %17 : vector<1x256xf32> to vector<4x256xf32>
    %19 = arith.mulf %3, %18 : vector<4x256xf32>
    %20 = arith.truncf %19 : vector<4x256xf32> to vector<4x256xbf16>
    %21 = arith.truncf %11 : vector<4x256xf32> to vector<4x256xbf16>
    %cst_8 = arith.constant dense<0.000000e+00> : vector<256x256xf32>
    %22 = tpu.matmul %20, %21, %cst_8 {dimension_numbers = #tpu.dot_dimension_numbers<[0], [0], [1], [1], [0, 1, 1, 1], [], []>} : vector<4x256xbf16>, vector<4x256xbf16>, vector<256x256xf32> -> vector<256x256xf32>
    %c0_9 = arith.constant 0 : index
    %c0_10 = arith.constant 0 : index
    %c0_11 = arith.constant 0 : index
    %23 = vector.load %arg5[%c0_9, %c0_10, %c0_11] : memref<1x256x256xf32, #tpu.memory_space<vmem>>, vector<1x256x256xf32>
    %24 = vector.shape_cast %23 : vector<1x256x256xf32> to vector<256x256xf32>
    %25 = vector.shape_cast %22 : vector<256x256xf32> to vector<1x256x256xf32>
    tpu.vector_store %arg5[%c0_9, %c0_10, %c0_11], %25 {strides = array<i32>} : memref<1x256x256xf32, #tpu.memory_space<vmem>>, vector<1x256x256xf32>,
    return
  }
  func.func @transform_0(%arg0: i32, %arg1: i32, %arg2: i32) -> (i32, i32, i32) {
    %c0_i32 = arith.constant 0 : i32
    %c0_i32_0 = arith.constant 0 : i32
    return %arg1, %c0_i32, %arg2 : i32, i32, i32
  }
  func.func @transform_1(%arg0: i32, %arg1: i32, %arg2: i32) -> (i32, i32, i32) {
    %c0_i32 = arith.constant 0 : i32
    %c0_i32_0 = arith.constant 0 : i32
    return %arg1, %c0_i32, %arg0 : i32, i32, i32
  }
  func.func @transform_2(%arg0: i32, %arg1: i32, %arg2: i32) -> (i32, i32, i32) {
    %c0_i32 = arith.constant 0 : i32
    return %arg1, %arg0, %arg2 : i32, i32, i32
  }
}

</mosaic_0001>

<llo_original>
// kernel: tpu_custom_call.1
$region0: #{tpu_custom_call.1}
  #allocation0 [shape = 'u32[]', space=smem, size = 0x4, offset = 0x4, fixed_abs, tag = 'smem constant byte address 0x4 - core index']
  #allocation1 [shape = 'u32[144,128]{1,0:T(1,128)}', space=vmem, size = 0x12000, scoped, tag = 'internal scratch']
  %s0 = inlined_call_operand.hbm [shape: f32[2,4,256], index: 0, kind: input, shape index: {}]
  %s1 = inlined_call_operand.hbm [shape: f32[2,4,256], index: 1, kind: input, shape index: {}]
  %s2 = inlined_call_operand.hbm [shape: f32[2,256,256], index: 2, kind: output, shape index: {}]
  %s3 = sld [smem:[#allocation0]]
  $region49: #{tpu_custom_call.1} parent=0
    _
  %s5 = ssub.s32 1, %s3
  %s6 = scalar_select 0, %s5, %s3
  $region1: #{tpu_custom_call.1} parent=0
    #allocation2 [shape = 'u8[8192]{0}', space=vmem, size = 0x2000, scoped, tag = 'input window, operand 0']
    #allocation3 [shape = 's32[2]{0}', space=sflag, size = 0x8, scoped, tag = 'scoped memory for tpu_custom_call.1']
    #allocation4 [shape = 's32[2]{0}', space=sflag, size = 0x8, scoped, tag = 'scoped memory for tpu_custom_call.1']
    #allocation5 [shape = 'u8[8192]{0}', space=vmem, size = 0x2000, scoped, tag = 'input window, operand 1']
    #allocation6 [shape = 's32[2]{0}', space=sflag, size = 0x8, scoped, tag = 'scoped memory for tpu_custom_call.1']
    #allocation7 [shape = 'u8[524288]{0}', space=vmem, size = 0x80000, scoped, tag = 'output window, operand 0']
    %7 = vsyncpa [#allocation3], 0
    %s8 = scalar_lea.sflag [#allocation3], 1
    %9 = vsyncpa %s8, 0
    %10 = vsyncpa [#allocation6], 0
    %s11 = scalar_lea.sflag [#allocation6], 1
    %12 = vsyncpa %s11, 0
    %13 = vsyncpa [#allocation4], 0
    %s14 = scalar_lea.sflag [#allocation4], 1
    %15 = vsyncpa %s14, 0
    loop: start=0, step=1, limit=4
    $region2: #{tpu_custom_call.1} parent=1 // loop_pre_header
      _
    $region3: #{tpu_custom_call.1} parent=1 // loop_header
      %s17 = sphi 0, %s21
      %p18 = scmp.ge.s32.totalorder %s17, 4
      %s24 = sphi 0, %s43
      %s25 = sphi 0, %s39
      %s26 = sphi 0, %s35
      %s27 = sphi 0, %s24
      %s28 = sphi 0, %s25
      %s29 = sphi 0, %s26
      %s30 = sphi 0, %s27
      %s31 = sphi 0, %s28
      %s32 = sphi 0, %s29
      %s48 = sphi 0, %s50
      %s51 = sphi 0, %s48
      %s52 = sphi 0, %s51
      %s68 = sphi 0, %s52
      %s76 = sphi 0, %s78
      %s79 = sphi 0, %s76
      %s80 = sphi 0, %s79
      %s96 = sphi 0, %s80
      %s106 = sphi 0, %s108
      %s109 = sphi 0, %s106
      %s110 = sphi 0, %s109
      %s126 = sphi 0, %s110
    $region4: #{tpu_custom_call.1} parent=1 // loop_header_branch
      %20 = sbr.rel (%p18) target = $region8
    $region5: #{tpu_custom_call.1} parent=1 // loop_body
      %s22 = ssub.s32 %s17, 1
      %s23 = ssub.s32 %s17, 2
      %s33 = sadd.s32 1, %s26
      %p34 = scmp.ge.s32.totalorder %s33, 1
      %s35 = scalar_select %p34, 0, %s33
      %s36 = sadd.s32 1, %s25
      %s37 = scalar_select %p34, %s36, %s25
      %p38 = scmp.ge.s32.totalorder %s37, 2
      %s39 = scalar_select %p38, 0, %s37
      %s40 = sadd.s32 1, %s24
      %s41 = scalar_select %p38, %s40, %s24
      %p42 = scmp.ge.s32.totalorder %s41, 1
      %s43 = scalar_select %p42, 0, %s41
      %s44 = ssub.s32 %s25, %s39
      %s45 = ssub.s32 %s26, %s35
      %s46 = sor.u32 %s44, %s45
      %p47 = scmp.eq.s32.totalorder %s46, 0
      %s49 = sadd.s32 %s48, 1
      %s50 = scalar_select %p47, %s48, %s49
      %p53 = pneg %p47
      %p54 = scmp.eq.s32.totalorder %s17, 1
      %p55 = por %p53, %p54
      %p56 = scmp.ne.s32.totalorder %s48, %s51
      %p57 = scmp.eq.s32.totalorder %s17, 0
      %p58 = por %p56, %p57
      %p59 = scmp.ne.s32.totalorder %s48, %s51
      %p60 = scmp.eq.s32.totalorder %s22, 1
      %p61 = por %p59, %p60
      %p62 = scmp.ne.s32.totalorder %s51, %s52
      %p63 = scmp.eq.s32.totalorder %s22, 0
      %p64 = por %p62, %p63
      %p65 = scmp.ne.s32.totalorder %s51, %s52
      %p66 = scmp.eq.s32.totalorder %s23, 1
      %p67 = por %p65, %p66
      %p69 = scmp.ne.s32.totalorder %s52, %s68
      %p70 = scmp.eq.s32.totalorder %s23, 0
      %p71 = por %p69, %p70
      %s72 = ssub.s32 %s25, %s39
      %s73 = ssub.s32 %s24, %s43
      %s74 = sor.u32 %s72, %s73
      %p75 = scmp.eq.s32.totalorder %s74, 0
      %s77 = sadd.s32 %s76, 1
      %s78 = scalar_select %p75, %s76, %s77
      %p81 = pneg %p75
      %p82 = scmp.eq.s32.totalorder %s17, 1
      %p83 = por %p81, %p82
      %p84 = scmp.ne.s32.totalorder %s76, %s79
      %p85 = scmp.eq.s32.totalorder %s17, 0
      %p86 = por %p84, %p85
      %p87 = scmp.ne.s32.totalorder %s76, %s79
      %p88 = scmp.eq.s32.totalorder %s22, 1
      %p89 = por %p87, %p88
      %p90 = scmp.ne.s32.totalorder %s79, %s80
      %p91 = scmp.eq.s32.totalorder %s22, 0
      %p92 = por %p90, %p91
      %p93 = scmp.ne.s32.totalorder %s79, %s80
      %p94 = scmp.eq.s32.totalorder %s23, 1
      %p95 = por %p93, %p94
      %p97 = scmp.ne.s32.totalorder %s80, %s96
      %p98 = scmp.eq.s32.totalorder %s23, 0
      %p99 = por %p97, %p98
      %s100 = ssub.s32 %s25, %s39
      %s101 = ssub.s32 %s24, %s43
      %s102 = sor.u32 %s100, %s101
      %s103 = ssub.s32 %s26, %s35
      %s104 = sor.u32 %s102, %s103
      %p105 = scmp.eq.s32.totalorder %s104, 0
      %s107 = sadd.s32 %s106, 1
      %s108 = scalar_select %p105, %s106, %s107
      %p111 = pneg %p105
      %p112 = scmp.eq.s32.totalorder %s17, 1
      %p113 = por %p111, %p112
      %p114 = scmp.ne.s32.totalorder %s106, %s109
      %p115 = scmp.eq.s32.totalorder %s17, 0
      %p116 = por %p114, %p115
      %p117 = scmp.ne.s32.totalorder %s106, %s109
      %p118 = scmp.eq.s32.totalorder %s22, 1
      %p119 = por %p117, %p118
      %p120 = scmp.ne.s32.totalorder %s109, %s110
      %p121 = scmp.eq.s32.totalorder %s22, 0
      %p122 = por %p120, %p121
      %p123 = scmp.ne.s32.totalorder %s109, %s110
      %p124 = scmp.eq.s32.totalorder %s23, 1
      %p125 = por %p123, %p124
      %p127 = scmp.ne.s32.totalorder %s110, %s126
      %p128 = scmp.eq.s32.totalorder %s23, 0
      %p129 = por %p127, %p128
      %p130 = scmp.le.s32.totalorder 1, %s17
      %p131 = scmp.lt.s32.totalorder %s17, 3
      %p132 = pnand %p130, %p131
      %p133 = pneg %p132
      // Predicated region
      $region9: #{tpu_custom_call.1} parent=5 // pred_check
        _
      $region10: #{tpu_custom_call.1} parent=5 // pred_check_branch
        %135 = sbr.rel (%p132) target = $region12
      $region11: #{tpu_custom_call.1} parent=5 // pred_region
        %s136 = ssub.s32 %s17, 1
      $region12: #{tpu_custom_call.1} parent=5 // pred_fallthru
        _
      %p137 = scmp.lt.s32.totalorder %s17, 2
      // Predicated region
      $region13: #{tpu_custom_call.1} parent=5 // pred_check
        %p138 = pneg %p137
      $region14: #{tpu_custom_call.1} parent=5 // pred_check_branch
        %140 = sbr.rel (%p138) target = $region16
      $region15: #{tpu_custom_call.1} parent=5 // pred_region
        // Predicated region
        $region17: #{tpu_custom_call.1} parent=15 // pred_check
          %p141 = pneg %p58
        $region18: #{tpu_custom_call.1} parent=15 // pred_check_branch
          %143 = sbr.rel (%p141) target = $region20
        $region19: #{tpu_custom_call.1} parent=15 // pred_region
          %s144 = sand.u32 %s48, 1
          %s145 = scalar_lea.sflag [#allocation3], %s144
          %s146 = sand.u32 %s48, 1
          %s147 = smul.addr %s146, 8
          %s148 = scalar_lea.vmem [#allocation2], %s147
          %s149 = smul.u32 2, %s26
          %s151 = ssub.s32 128, 128
          %152 = vsyncadd %s145, %s151
          %s153 = smul.addr %s25, 2
          %s154 = sadd.s32 %s149, %s153
          %s155 = smul.addr %s154, 64
          %s156 = scalar_lea.hbm %s0, %s155
          %s158 = sshll.u32 %s148, 4
          %s159 = int_to_ptr.vmem [resolvable:$true] %s158
          %161 = dma.hbm_to_vmem [thread:$0]  %s156, 128, %s159, %s145
        $region20: #{tpu_custom_call.1} parent=15 // pred_fallthru
          _
        // Predicated region
        $region21: #{tpu_custom_call.1} parent=15 // pred_check
          %p162 = pneg %p86
        $region22: #{tpu_custom_call.1} parent=15 // pred_check_branch
          %164 = sbr.rel (%p162) target = $region24
        $region23: #{tpu_custom_call.1} parent=15 // pred_region
          %s165 = sand.u32 %s76, 1
          %s166 = scalar_lea.sflag [#allocation6], %s165
          %s167 = sand.u32 %s76, 1
          %s168 = smul.addr %s167, 8
          %s169 = scalar_lea.vmem [#allocation5], %s168
          %s170 = smul.u32 2, %s24
          %s172 = ssub.s32 128, 128
          %173 = vsyncadd %s166, %s172
          %s174 = smul.addr %s25, 2
          %s175 = sadd.s32 %s170, %s174
          %s176 = smul.addr %s175, 64
          %s177 = scalar_lea.hbm %s1, %s176
          %s179 = sshll.u32 %s169, 4
          %s180 = int_to_ptr.vmem [resolvable:$true] %s179
          %182 = dma.hbm_to_vmem [thread:$0]  %s177, 128, %s180, %s166
        $region24: #{tpu_custom_call.1} parent=15 // pred_fallthru
          _
      $region16: #{tpu_custom_call.1} parent=5 // pred_fallthru
        _
      %p183 = scmp.le.s32.totalorder 1, %s17
      %p184 = scmp.lt.s32.totalorder %s17, 3
      %p185 = pnand %p183, %p184
      %p186 = pneg %p185
      // Predicated region
      $region25: #{tpu_custom_call.1} parent=5 // pred_check
        _
      $region26: #{tpu_custom_call.1} parent=5 // pred_check_branch
        %188 = sbr.rel (%p185) target = $region28
      $region27: #{tpu_custom_call.1} parent=5 // pred_region
        %s189 = ssub.s32 %s17, 1
        %s190 = sand.u32 %s51, 1
        %s191 = scalar_lea.sflag [#allocation3], %s190
        %s192 = sand.u32 %s51, 1
        %s193 = smul.addr %s192, 8
        %s194 = scalar_lea.vmem [#allocation2], %s193
        // Predicated region
        $region29: #{tpu_custom_call.1} parent=27 // pred_check
          %p195 = pneg %p64
        $region30: #{tpu_custom_call.1} parent=27 // pred_check_branch
          %197 = sbr.rel (%p195) target = $region32
        $region31: #{tpu_custom_call.1} parent=27 // pred_region
          %198 = dma.done %s191, 128
        $region32: #{tpu_custom_call.1} parent=27 // pred_fallthru
          _
        %s199 = sand.u32 %s79, 1
        %s200 = scalar_lea.sflag [#allocation6], %s199
        %s201 = sand.u32 %s79, 1
        %s202 = smul.addr %s201, 8
        %s203 = scalar_lea.vmem [#allocation5], %s202
        // Predicated region
        $region33: #{tpu_custom_call.1} parent=27 // pred_check
          %p204 = pneg %p92
        $region34: #{tpu_custom_call.1} parent=27 // pred_check_branch
          %206 = sbr.rel (%p204) target = $region36
        $region35: #{tpu_custom_call.1} parent=27 // pred_region
          %207 = dma.done %s200, 128
        $region36: #{tpu_custom_call.1} parent=27 // pred_fallthru
          _
        %s208 = sand.u32 %s51, 1
        %s209 = scalar_lea.sflag [#allocation3], %s208
        %s210 = sand.u32 %s51, 1
        %s211 = smul.addr %s210, 8
        %s212 = scalar_lea.vmem [#allocation2], %s211
        %p213 = pneg %p64
        %p214 = pneg %p61
        %s215 = sand.u32 %s79, 1
        %s216 = scalar_lea.sflag [#allocation6], %s215
        %s217 = sand.u32 %s79, 1
        %s218 = smul.addr %s217, 8
        %s219 = scalar_lea.vmem [#allocation5], %s218
        %p220 = pneg %p92
        %p221 = pneg %p89
        %p222 = pneg %p122
        %p223 = pneg %p119
        %s224 = sand.u32 %s109, 1
        %s225 = scalar_lea.sflag [#allocation4], %s224
        %s226 = sand.u32 %s109, 1
        %s227 = smul.addr %s226, 512
        %s228 = scalar_lea.vmem [#allocation7], %s227
        %s229 = smul.u32 2, %s29
        %s230 = smul.u32 2, %s27
        %s231 = smul.u32 32, %s27
        %s232 = smul.u32 2, %s29
        %v234 = vld [vmem:[%s194] sm:$0xff]
        %v235 = vld [vmem:[%s203] sm:$0xff]
        %v236 = vmul.f32 %v234, %v234
        %v238 = vcombine.high %v236, %v236
        %vm240 = vcmask 1043456
        %v241 = vsel %vm240, %v236, 0.0
        %v242 = vrot.slane %v241, 4
        %v243 = vadd.f32 %v241, %v242
        %v244 = vrot.slane %v243, 2
        %v245 = vadd.f32 %v243, %v244
        %v246 = vrot.slane %v245, 1
        %v247 = vadd.f32 %v245, %v246
        %v248 = vsel %vm240, %v238, 0.0
        %v249 = vrot.slane %v248, 4
        %v250 = vadd.f32 %v248, %v249
        %v251 = vrot.slane %v250, 2
        %v252 = vadd.f32 %v250, %v251
        %v253 = vrot.slane %v252, 1
        %v254 = vadd.f32 %v252, %v253
        %v255 = vmax.f32 %v247, 1e-24
        %v256 = vmax.f32 %v254, 1e-24
        %v257 = vrsqrt.pop %v255
        %v258 = vrsqrt.pop %v256
        %v261 = vcombine.low %v257, %v258
        %v263 = vmul.f32 %v234, %v261
        %v264 = vmul.f32 %v235, %v235
        %v266 = vcombine.high %v264, %v264
        %v268 = vsel %vm240, %v264, 0.0
        %v269 = vrot.slane %v268, 4
        %v270 = vadd.f32 %v268, %v269
        %v271 = vrot.slane %v270, 2
        %v272 = vadd.f32 %v270, %v271
        %v273 = vrot.slane %v272, 1
        %v274 = vadd.f32 %v272, %v273
        %v275 = vsel %vm240, %v266, 0.0
        %v276 = vrot.slane %v275, 4
        %v277 = vadd.f32 %v275, %v276
        %v278 = vrot.slane %v277, 2
        %v279 = vadd.f32 %v277, %v278
        %v280 = vrot.slane %v279, 1
        %v281 = vadd.f32 %v279, %v280
        %v282 = vmax.f32 %v274, 1e-24
        %v283 = vmax.f32 %v281, 1e-24
        %v284 = vrsqrt.pop %v282
        %v285 = vrsqrt.pop %v283
        %v288 = vcombine.low %v284, %v285
        %v290 = vmul.f32 %v235, %v288
        %v292 = vcombine.high %v290, %v290
        %v294 = vpack.c.bf16 %v290, %v290
        %v295 = vpack.c.bf16 %v292, %v292
        %v297 = vcombine.high %v263, %v263
        %v299 = vpack.c.bf16 %v263, %v263
        %v300 = vpack.c.bf16 %v297, %v297
        %301 = vxpose.xlu0.c.b16.start [1/8] %v294, 128
        %302 = vxpose.xlu0.c.b16.cont [2/8] 0, 128
        %303 = vxpose.xlu0.c.b16.cont [3/8] 0, 128
        %304 = vxpose.xlu0.c.b16.cont [4/8] 0, 128
        %305 = vxpose.xlu0.c.b16.cont [5/8] 0, 128
        %306 = vxpose.xlu0.c.b16.cont [6/8] 0, 128
        %307 = vxpose.xlu0.c.b16.cont [7/8] 0, 128
        %308 = vxpose.xlu0.c.b16.end [8/8] 0, 128
        %v309 = vpop.trf.xlu0
        %v310 = vpop.trf.xlu0
        %v311 = vpop.trf.xlu0
        %v312 = vpop.trf.xlu0
        %v313 = vpop.trf.xlu0
        %v314 = vpop.trf.xlu0
        %v315 = vpop.trf.xlu0
        %v316 = vpop.trf.xlu0
        %317 = vxpose.xlu0.c.b16.start [1/8] %v295, 128
        %318 = vxpose.xlu0.c.b16.cont [2/8] 0, 128
        %319 = vxpose.xlu0.c.b16.cont [3/8] 0, 128
        %320 = vxpose.xlu0.c.b16.cont [4/8] 0, 128
        %321 = vxpose.xlu0.c.b16.cont [5/8] 0, 128
        %322 = vxpose.xlu0.c.b16.cont [6/8] 0, 128
        %323 = vxpose.xlu0.c.b16.cont [7/8] 0, 128
        %324 = vxpose.xlu0.c.b16.end [8/8] 0, 128
        %v325 = vpop.trf.xlu0
        %v326 = vpop.trf.xlu0
        %v327 = vpop.trf.xlu0
        %v328 = vpop.trf.xlu0
        %v329 = vpop.trf.xlu0
        %v330 = vpop.trf.xlu0
        %v331 = vpop.trf.xlu0
        %v332 = vpop.trf.xlu0
        %vm333 = vcmask 31744
        %v335 = vsel %vm333, %v309, 0
        %v338 = vsel %vm333, %v310, 0
        %v341 = vsel %vm333, %v311, 0
        %v344 = vsel %vm333, %v312, 0
        %v347 = vsel %vm333, %v313, 0
        %v350 = vsel %vm333, %v314, 0
        %v353 = vsel %vm333, %v315, 0
        %v356 = vsel %vm333, %v316, 0
        %v359 = vsel %vm333, %v325, 0
        %v362 = vsel %vm333, %v326, 0
        %v365 = vsel %vm333, %v327, 0
        %v368 = vsel %vm333, %v328, 0
        %v371 = vsel %vm333, %v329, 0
        %v374 = vsel %vm333, %v330, 0
        %v377 = vsel %vm333, %v331, 0
        %v380 = vsel %vm333, %v332, 0
        %vm382 = vcmask 1041408
        %v384 = vsel %vm382, %v299, 0
        %v387 = vsel %vm382, %v300, 0
        %389 = vmatprep.subr.bf16.mxu0 %v387
        %390 = vmatpush1.bf16.msra.mxu0 %v384
        %391 = vmatprep.subr.bf16.mxu0 0
        %392 = vmatpush1.bf16.msra.mxu0 0
        %393 = vmatprep.subr.bf16.mxu0 0
        %394 = vmatpush1.bf16.msra.mxu0 0
        %395 = vmatprep.subr.bf16.mxu0 0
        %396 = vmatpush1.bf16.msra.mxu0 0
        %397 = vmatprep.subr.bf16.mxu0 0
        %398 = vmatpush1.bf16.msra.mxu0 0
        %399 = vmatprep.subr.bf16.mxu0 0
        %400 = vmatpush1.bf16.msra.mxu0 0
        %401 = vmatprep.subr.bf16.mxu0 0
        %402 = vmatpush1.bf16.msra.mxu0 0
        %403 = vmatprep.subr.bf16.mxu0 0
        %404 = vmatpush1.bf16.msra.mxu0 0
        %405 = vmatprep.subr.bf16.mxu0 0
        %406 = vmatpush1.bf16.msra.mxu0 0
        %407 = vmatprep.subr.bf16.mxu0 0
        %408 = vmatpush1.bf16.msra.mxu0 0
        %409 = vmatprep.subr.bf16.mxu0 0
        %410 = vmatpush1.bf16.msra.mxu0 0
        %411 = vmatprep.subr.bf16.mxu0 0
        %412 = vmatpush1.bf16.msra.mxu0 0
        %413 = vmatprep.subr.bf16.mxu0 0
        %414 = vmatpush1.bf16.msra.mxu0 0
        %415 = vmatprep.subr.bf16.mxu0 0
        %416 = vmatpush1.bf16.msra.mxu0 0
        %417 = vmatprep.subr.bf16.mxu0 0
        %418 = vmatpush1.bf16.msra.mxu0 0
        %419 = vmatprep.subr.bf16.mxu0 0
        %420 = vmatpush1.bf16.msra.mxu0 0
        %421 = vmatprep.mubr.bf16.mxu0 0
        %422 = vmatmul.mubr.bf16.gmra.mrb[0].mxu0 %v335
        %v423 = vpop.f32.mrb[0].mxu0
        %v424 = vadd.f32 0.0, %v423
        %v425 = vpop.f32.mrb[0].mxu0
        %v426 = vadd.f32 0.0, %v425
        %v427 = vpop.f32.mrb[0].mxu0
        %v428 = vadd.f32 0.0, %v427
        %v429 = vpop.f32.mrb[0].mxu0
        %v430 = vadd.f32 0.0, %v429
        %431 = vmatprep.mubr.bf16.mxu0 0
        %432 = vmatmul.mubr.bf16.gmra.mrb[0].mxu0 %v338
        %v433 = vpop.f32.mrb[0].mxu0
        %v434 = vadd.f32 0.0, %v433
        %v435 = vpop.f32.mrb[0].mxu0
        %v436 = vadd.f32 0.0, %v435
        %v437 = vpop.f32.mrb[0].mxu0
        %v438 = vadd.f32 0.0, %v437
        %v439 = vpop.f32.mrb[0].mxu0
        %v440 = vadd.f32 0.0, %v439
        %441 = vmatprep.mubr.bf16.mxu0 0
        %442 = vmatmul.mubr.bf16.gmra.mrb[0].mxu0 %v341
        %v443 = vpop.f32.mrb[0].mxu0
        %v444 = vadd.f32 0.0, %v443
        %v445 = vpop.f32.mrb[0].mxu0
        %v446 = vadd.f32 0.0, %v445
        %v447 = vpop.f32.mrb[0].mxu0
        %v448 = vadd.f32 0.0, %v447
        %v449 = vpop.f32.mrb[0].mxu0
        %v450 = vadd.f32 0.0, %v449
        %451 = vmatprep.mubr.bf16.mxu0 0
        %452 = vmatmul.mubr.bf16.gmra.mrb[0].mxu0 %v344
        %v453 = vpop.f32.mrb[0].mxu0
        %v454 = vadd.f32 0.0, %v453
        %v455 = vpop.f32.mrb[0].mxu0
        %v456 = vadd.f32 0.0, %v455
        %v457 = vpop.f32.mrb[0].mxu0
        %v458 = vadd.f32 0.0, %v457
        %v459 = vpop.f32.mrb[0].mxu0
        %v460 = vadd.f32 0.0, %v459
        %461 = vmatprep.mubr.bf16.mxu0 0
        %462 = vmatmul.mubr.bf16.gmra.mrb[0].mxu0 %v347
        %v463 = vpop.f32.mrb[0].mxu0
        %v464 = vadd.f32 0.0, %v463
        %v465 = vpop.f32.mrb[0].mxu0
        %v466 = vadd.f32 0.0, %v465
        %v467 = vpop.f32.mrb[0].mxu0
        %v468 = vadd.f32 0.0, %v467
        %v469 = vpop.f32.mrb[0].mxu0
        %v470 = vadd.f32 0.0, %v469
        %471 = vmatprep.mubr.bf16.mxu0 0
        %472 = vmatmul.mubr.bf16.gmra.mrb[0].mxu0 %v350
        %v473 = vpop.f32.mrb[0].mxu0
        %v474 = vadd.f32 0.0, %v473
        %v475 = vpop.f32.mrb[0].mxu0
        %v476 = vadd.f32 0.0, %v475
        %v477 = vpop.f32.mrb[0].mxu0
        %v478 = vadd.f32 0.0, %v477
        %v479 = vpop.f32.mrb[0].mxu0
        %v480 = vadd.f32 0.0, %v479
        %481 = vmatprep.mubr.bf16.mxu0 0
        %482 = vmatmul.mubr.bf16.gmra.mrb[0].mxu0 %v353
        %v483 = vpop.f32.mrb[0].mxu0
        %v484 = vadd.f32 0.0, %v483
        %v485 = vpop.f32.mrb[0].mxu0
        %v486 = vadd.f32 0.0, %v485
        %v487 = vpop.f32.mrb[0].mxu0
        %v488 = vadd.f32 0.0, %v487
        %v489 = vpop.f32.mrb[0].mxu0
        %v490 = vadd.f32 0.0, %v489
        %491 = vmatprep.mubr.bf16.mxu0 0
        %492 = vmatmul.mubr.bf16.gmra.mrb[0].mxu0 %v356
        %v493 = vpop.f32.mrb[0].mxu0
        %v494 = vadd.f32 0.0, %v493
        %v495 = vpop.f32.mrb[0].mxu0
        %v496 = vadd.f32 0.0, %v495
        %v497 = vpop.f32.mrb[0].mxu0
        %v498 = vadd.f32 0.0, %v497
        %v499 = vpop.f32.mrb[0].mxu0
        %v500 = vadd.f32 0.0, %v499
        %501 = vmatprep.mubr.bf16.mxu0 0
        %502 = vmatmul.mubr.bf16.gmra.mrb[0].mxu0 %v359
        %v503 = vpop.f32.mrb[0].mxu0
        %v504 = vadd.f32 0.0, %v503
        %v505 = vpop.f32.mrb[0].mxu0
        %v506 = vadd.f32 0.0, %v505
        %v507 = vpop.f32.mrb[0].mxu0
        %v508 = vadd.f32 0.0, %v507
        %v509 = vpop.f32.mrb[0].mxu0
        %v510 = vadd.f32 0.0, %v509
        %511 = vmatprep.mubr.bf16.mxu0 0
        %512 = vmatmul.mubr.bf16.gmra.mrb[0].mxu0 %v362
        %v513 = vpop.f32.mrb[0].mxu0
        %v514 = vadd.f32 0.0, %v513
        %v515 = vpop.f32.mrb[0].mxu0
        %v516 = vadd.f32 0.0, %v515
        %v517 = vpop.f32.mrb[0].mxu0
        %v518 = vadd.f32 0.0, %v517
        %v519 = vpop.f32.mrb[0].mxu0
        %v520 = vadd.f32 0.0, %v519
        %521 = vmatprep.mubr.bf16.mxu0 0
        %522 = vmatmul.mubr.bf16.gmra.mrb[0].mxu0 %v365
        %v523 = vpop.f32.mrb[0].mxu0
        %v524 = vadd.f32 0.0, %v523
        %v525 = vpop.f32.mrb[0].mxu0
        %v526 = vadd.f32 0.0, %v525
        %v527 = vpop.f32.mrb[0].mxu0
        %v528 = vadd.f32 0.0, %v527
        %v529 = vpop.f32.mrb[0].mxu0
        %v530 = vadd.f32 0.0, %v529
        %531 = vmatprep.mubr.bf16.mxu0 0
        %532 = vmatmul.mubr.bf16.gmra.mrb[0].mxu0 %v368
        %v533 = vpop.f32.mrb[0].mxu0
        %v534 = vadd.f32 0.0, %v533
        %v535 = vpop.f32.mrb[0].mxu0
        %v536 = vadd.f32 0.0, %v535
        %v537 = vpop.f32.mrb[0].mxu0
        %v538 = vadd.f32 0.0, %v537
        %v539 = vpop.f32.mrb[0].mxu0
        %v540 = vadd.f32 0.0, %v539
        %541 = vmatprep.mubr.bf16.mxu0 0
        %542 = vmatmul.mubr.bf16.gmra.mrb[0].mxu0 %v371
        %v543 = vpop.f32.mrb[0].mxu0
        %v544 = vadd.f32 0.0, %v543
        %v545 = vpop.f32.mrb[0].mxu0
        %v546 = vadd.f32 0.0, %v545
        %v547 = vpop.f32.mrb[0].mxu0
        %v548 = vadd.f32 0.0, %v547
        %v549 = vpop.f32.mrb[0].mxu0
        %v550 = vadd.f32 0.0, %v549
        %551 = vmatprep.mubr.bf16.mxu0 0
        %552 = vmatmul.mubr.bf16.gmra.mrb[0].mxu0 %v374
        %v553 = vpop.f32.mrb[0].mxu0
        %v554 = vadd.f32 0.0, %v553
        %v555 = vpop.f32.mrb[0].mxu0
        %v556 = vadd.f32 0.0, %v555
        %v557 = vpop.f32.mrb[0].mxu0
        %v558 = vadd.f32 0.0, %v557
        %v559 = vpop.f32.mrb[0].mxu0
        %v560 = vadd.f32 0.0, %v559
        %561 = vmatprep.mubr.bf16.mxu0 0
        %562 = vmatmul.mubr.bf16.gmra.mrb[0].mxu0 %v377
        %v563 = vpop.f32.mrb[0].mxu0
        %v564 = vadd.f32 0.0, %v563
        %v565 = vpop.f32.mrb[0].mxu0
        %v566 = vadd.f32 0.0, %v565
        %v567 = vpop.f32.mrb[0].mxu0
        %v568 = vadd.f32 0.0, %v567
        %v569 = vpop.f32.mrb[0].mxu0
        %v570 = vadd.f32 0.0, %v569
        %571 = vmatprep.mubr.bf16.mxu0 0
        %572 = vmatmul.mubr.bf16.gmra.mrb[0].mxu0 %v380
        %v573 = vpop.f32.mrb[0].mxu0
        %v574 = vadd.f32 0.0, %v573
        %v575 = vpop.f32.mrb[0].mxu0
        %v576 = vadd.f32 0.0, %v575
        %v577 = vpop.f32.mrb[0].mxu0
        %v578 = vadd.f32 0.0, %v577
        %v579 = vpop.f32.mrb[0].mxu0
        %v580 = vadd.f32 0.0, %v579
        %581 = vdwg.mxu0
        %582 = vst [vmem:[%s228] sm:$0xff] %v424
        %583 = vst [vmem:[%s228 + $0x8] sm:$0xff] %v426
        %584 = vst [vmem:[%s228 + $0x10] sm:$0xff] %v428
        %585 = vst [vmem:[%s228 + $0x18] sm:$0xff] %v430
        %586 = vst [vmem:[%s228 + $0x20] sm:$0xff] %v434
        %587 = vst [vmem:[%s228 + $0x28] sm:$0xff] %v436
        %588 = vst [vmem:[%s228 + $0x30] sm:$0xff] %v438
        %589 = vst [vmem:[%s228 + $0x38] sm:$0xff] %v440
        %590 = vst [vmem:[%s228 + $0x40] sm:$0xff] %v444
        %591 = vst [vmem:[%s228 + $0x48] sm:$0xff] %v446
        %592 = vst [vmem:[%s228 + $0x50] sm:$0xff] %v448
        %593 = vst [vmem:[%s228 + $0x58] sm:$0xff] %v450
        %594 = vst [vmem:[%s228 + $0x60] sm:$0xff] %v454
        %595 = vst [vmem:[%s228 + $0x68] sm:$0xff] %v456
        %596 = vst [vmem:[%s228 + $0x70] sm:$0xff] %v458
        %597 = vst [vmem:[%s228 + $0x78] sm:$0xff] %v460
        %598 = vst [vmem:[%s228 + $0x80] sm:$0xff] %v464
        %599 = vst [vmem:[%s228 + $0x88] sm:$0xff] %v466
        %600 = vst [vmem:[%s228 + $0x90] sm:$0xff] %v468
        %601 = vst [vmem:[%s228 + $0x98] sm:$0xff] %v470
        %602 = vst [vmem:[%s228 + $0xa0] sm:$0xff] %v474
        %603 = vst [vmem:[%s228 + $0xa8] sm:$0xff] %v476
        %604 = vst [vmem:[%s228 + $0xb0] sm:$0xff] %v478
        %605 = vst [vmem:[%s228 + $0xb8] sm:$0xff] %v480
        %606 = vst [vmem:[%s228 + $0xc0] sm:$0xff] %v484
        %607 = vst [vmem:[%s228 + $0xc8] sm:$0xff] %v486
        %608 = vst [vmem:[%s228 + $0xd0] sm:$0xff] %v488
        %609 = vst [vmem:[%s228 + $0xd8] sm:$0xff] %v490
        %610 = vst [vmem:[%s228 + $0xe0] sm:$0xff] %v494
        %611 = vst [vmem:[%s228 + $0xe8] sm:$0xff] %v496
        %612 = vst [vmem:[%s228 + $0xf0] sm:$0xff] %v498
        %613 = vst [vmem:[%s228 + $0xf8] sm:$0xff] %v500
        %614 = vst [vmem:[%s228 + $0x100] sm:$0xff] %v504
        %615 = vst [vmem:[%s228 + $0x108] sm:$0xff] %v506
        %616 = vst [vmem:[%s228 + $0x110] sm:$0xff] %v508
        %617 = vst [vmem:[%s228 + $0x118] sm:$0xff] %v510
        %618 = vst [vmem:[%s228 + $0x120] sm:$0xff] %v514
        %619 = vst [vmem:[%s228 + $0x128] sm:$0xff] %v516
        %620 = vst [vmem:[%s228 + $0x130] sm:$0xff] %v518
        %621 = vst [vmem:[%s228 + $0x138] sm:$0xff] %v520
        %622 = vst [vmem:[%s228 + $0x140] sm:$0xff] %v524
        %623 = vst [vmem:[%s228 + $0x148] sm:$0xff] %v526
        %624 = vst [vmem:[%s228 + $0x150] sm:$0xff] %v528
        %625 = vst [vmem:[%s228 + $0x158] sm:$0xff] %v530
        %626 = vst [vmem:[%s228 + $0x160] sm:$0xff] %v534
        %627 = vst [vmem:[%s228 + $0x168] sm:$0xff] %v536
        %628 = vst [vmem:[%s228 + $0x170] sm:$0xff] %v538
        %629 = vst [vmem:[%s228 + $0x178] sm:$0xff] %v540
        %630 = vst [vmem:[%s228 + $0x180] sm:$0xff] %v544
        %631 = vst [vmem:[%s228 + $0x188] sm:$0xff] %v546
        %632 = vst [vmem:[%s228 + $0x190] sm:$0xff] %v548
        %633 = vst [vmem:[%s228 + $0x198] sm:$0xff] %v550
        %634 = vst [vmem:[%s228 + $0x1a0] sm:$0xff] %v554
        %635 = vst [vmem:[%s228 + $0x1a8] sm:$0xff] %v556
        %636 = vst [vmem:[%s228 + $0x1b0] sm:$0xff] %v558
        %637 = vst [vmem:[%s228 + $0x1b8] sm:$0xff] %v560
        %638 = vst [vmem:[%s228 + $0x1c0] sm:$0xff] %v564
        %639 = vst [vmem:[%s228 + $0x1c8] sm:$0xff] %v566
        %640 = vst [vmem:[%s228 + $0x1d0] sm:$0xff] %v568
        %641 = vst [vmem:[%s228 + $0x1d8] sm:$0xff] %v570
        %642 = vst [vmem:[%s228 + $0x1e0] sm:$0xff] %v574
        %643 = vst [vmem:[%s228 + $0x1e8] sm:$0xff] %v576
        %644 = vst [vmem:[%s228 + $0x1f0] sm:$0xff] %v578
        %645 = vst [vmem:[%s228 + $0x1f8] sm:$0xff] %v580
        %s646 = sand.u32 %s109, 1
        %s647 = scalar_lea.sflag [#allocation4], %s646
        %s648 = sand.u32 %s109, 1
        %s649 = smul.addr %s648, 512
        %s650 = scalar_lea.vmem [#allocation7], %s649
        // Predicated region
        $region37: #{tpu_custom_call.1} parent=27 // pred_check
          %p651 = pneg %p119
        $region38: #{tpu_custom_call.1} parent=27 // pred_check_branch
          %653 = sbr.rel (%p651) target = $region40
        $region39: #{tpu_custom_call.1} parent=27 // pred_region
          %s654 = smul.u32 32, %s27
          %s655 = smul.u32 2, %s29
          %s657 = ssub.s32 8192, 8192
          %658 = vsyncadd %s647, %s657
          %s659 = smul.addr %s654, 2
          %s660 = sadd.s32 %s655, %s659
          %s661 = smul.addr %s28, 64
          %s662 = sadd.s32 %s660, %s661
          %s663 = smul.addr %s662, 128
          %s664 = scalar_lea.hbm %s2, %s663
          %s665 = sshll.u32 %s650, 4
          %s666 = int_to_ptr.vmem [resolvable:$true] %s665
          %671 = dma.vmem_to_hbm [thread:$0]  %s666, 8192, %s664, %s647, 256, 256, 16
        $region40: #{tpu_custom_call.1} parent=27 // pred_fallthru
          _
      $region28: #{tpu_custom_call.1} parent=5 // pred_fallthru
        _
      %p672 = scmp.le.s32.totalorder 2, %s17
      // Predicated region
      $region41: #{tpu_custom_call.1} parent=5 // pred_check
        %p673 = pneg %p672
      $region42: #{tpu_custom_call.1} parent=5 // pred_check_branch
        %675 = sbr.rel (%p673) target = $region44
      $region43: #{tpu_custom_call.1} parent=5 // pred_region
        %s676 = ssub.s32 %s17, 2
        // Predicated region
        $region45: #{tpu_custom_call.1} parent=43 // pred_check
          %p677 = pneg %p125
        $region46: #{tpu_custom_call.1} parent=43 // pred_check_branch
          %679 = sbr.rel (%p677) target = $region48
        $region47: #{tpu_custom_call.1} parent=43 // pred_region
          %s680 = sand.u32 %s110, 1
          %s681 = scalar_lea.sflag [#allocation4], %s680
          %s682 = sand.u32 %s110, 1
          %s683 = smul.addr %s682, 512
          %s684 = scalar_lea.vmem [#allocation7], %s683
          %685 = dma.done %s681, 8192
        $region48: #{tpu_custom_call.1} parent=43 // pred_fallthru
          _
      $region44: #{tpu_custom_call.1} parent=5 // pred_fallthru
        _
    $region6: #{tpu_custom_call.1} parent=1 // loop_footer
      %s21 = sadd.s32 1, %s17
    $region7: #{tpu_custom_call.1} parent=1 // loop_footer_branch
      %16 = sbr.rel target = $region3
    $region8: #{tpu_custom_call.1} parent=1 // loop_exit
      _
    %686 = vsyncpa [#allocation3], 1
    %s687 = scalar_lea.sflag [#allocation3], 1
    %688 = vsyncpa %s687, 1
    %689 = vsyncpa [#allocation6], 1
    %s690 = scalar_lea.sflag [#allocation6], 1
    %691 = vsyncpa %s690, 1
    %692 = vsyncpa [#allocation4], 1
    %s693 = scalar_lea.sflag [#allocation4], 1
    %694 = vsyncpa %s693, 1

</llo_original>
